<compile_context>
chip_gen: v6e
topology: v6e:2x2x1
jax: 0.10.0
libtpu: 0.0.40
codegen_flags: <defaults>
</compile_context>

<pallas_src>
import functools

import jax
import jax.numpy as jnp
import numpy as np
from jax.experimental import pallas as pl
from jax.experimental.pallas import tpu as pltpu

BN_EPS = 1e-5
TM_MAX = 512          # row-tile upper bound (pipelined over the grid)


# -----------------------------------------------------------------------------
# VMEM sizing (generation-gated)
# -----------------------------------------------------------------------------
def _tpu_vmem_capacity_bytes():
    cap = 64 * 1024 * 1024  # conservative default (v7x per-core VMEM)
    try:
        info = pltpu.get_tpu_info()
        cap = int(getattr(info, "vmem_capacity_bytes", cap))
    except Exception:
        pass
    return cap


def _vmem_limit_bytes():
    # ~100 MiB on 128 MiB parts (v5e/v6e), ~50 MiB on 64 MiB parts (v7x).
    return int(_tpu_vmem_capacity_bytes() * 0.78)


def _vmem_tile_budget_bytes():
    # Headroom for compiler-internal scratch / pipeline bookkeeping.
    return max(_vmem_limit_bytes() - 16 * 1024 * 1024, 16 * 1024 * 1024)


def _round_up(x, m):
    return (x + m - 1) // m * m


def _pick_tn(Kp, Cp, tm, x_bytes, y_bytes, budget, epilogue):
    """Largest tn (multiple of 128 dividing Cp) whose double-buffered working
    set (x tile, weight tile, output tile, stats, rough in-kernel temporaries)
    fits the VMEM tile budget."""
    n128 = Cp // 128
    fixed = 2 * tm * Kp * x_bytes              # double-buffered input row tile
    if epilogue:
        fixed += tm * Kp * 6                   # f32 upcast + bf16 h temporaries
    for d in range(1, n128 + 1):
        if n128 % d:
            continue
        tn = Cp // d
        cost = (fixed
                + 2 * Kp * tn * 2              # double-buffered bf16 weight tile
                + 2 * tm * tn * y_bytes        # double-buffered output tile
                + tm * tn * 4                  # f32 accumulator temporary
                + 16 * tn * 4)                 # bias/gamma/beta/sb/stat rows
        if cost <= budget:
            return tn
    return 128


# -----------------------------------------------------------------------------
# In-kernel helpers (BN partial-stat accumulation + finalize into scale/bias)
# -----------------------------------------------------------------------------
def _stats_update(i, y, sum_ref, ssq_ref, *, m_true, tm, has_pad):
    @pl.when(i == 0)
    def _():
        sum_ref[...] = jnp.zeros_like(sum_ref)
        ssq_ref[...] = jnp.zeros_like(ssq_ref)

    if has_pad:
        last = pl.num_programs(1) - 1

        # Steady-state tiles: no padded rows -> plain sums (frees VPU slots).
        @pl.when(i != last)
        def _():
            sum_ref[...] = sum_ref[...] + jnp.sum(y, axis=0, keepdims=True)
            ssq_ref[...] = ssq_ref[...] + jnp.sum(y * y, axis=0, keepdims=True)

        # Last row tile: mask padded batch rows out of the statistics.
        @pl.when(i == last)
        def _():
            row = jax.lax.broadcasted_iota(jnp.int32, (tm, 1), 0) + i * tm
            yv = jnp.where(row < m_true, y, 0.0)
            sum_ref[...] = sum_ref[...] + jnp.sum(yv, axis=0, keepdims=True)
            ssq_ref[...] = ssq_ref[...] + jnp.sum(yv * yv, axis=0, keepdims=True)
    else:
        sum_ref[...] = sum_ref[...] + jnp.sum(y, axis=0, keepdims=True)
        ssq_ref[...] = ssq_ref[...] + jnp.sum(y * y, axis=0, keepdims=True)


def _stats_finalize(i, g_ref, be_ref, sb_ref, sum_ref, ssq_ref, *, m_true):
    @pl.when(i == pl.num_programs(1) - 1)
    def _():
        inv_m = 1.0 / float(m_true)
        mean = sum_ref[...] * inv_m
        var = jnp.maximum(ssq_ref[...] * inv_m - mean * mean, 0.0)  # biased var (BN train)
        scale = g_ref[...] * jax.lax.rsqrt(var + BN_EPS)            # rsqrt -> EUP slot
        sb_ref[0:1, :] = scale
        sb_ref[1:2, :] = be_ref[...] - mean * scale


# -----------------------------------------------------------------------------
# Pallas kernels (grid = (column tiles, row tiles); row axis is "arbitrary")
# -----------------------------------------------------------------------------
def _linear_stats_kernel(x_ref, w_ref, b_ref, g_ref, be_ref,
                         y_ref, sb_ref, sum_ref, ssq_ref, *, m_true, tm, has_pad):
    """y = x @ W + b (f32 x cast to bf16 in-register, f32 acc); BN stats; finalize."""
    i = pl.program_id(1)
    x = x_ref[...].astype(jnp.bfloat16)
    y = jnp.dot(x, w_ref[...], preferred_element_type=jnp.float32) + b_ref[...]
    y_ref[...] = y.astype(y_ref.dtype)          # bf16 intermediate to HBM
    _stats_update(i, y, sum_ref, ssq_ref, m_true=m_true, tm=tm, has_pad=has_pad)
    _stats_finalize(i, g_ref, be_ref, sb_ref, sum_ref, ssq_ref, m_true=m_true)


def _act_linear_stats_kernel(yin_ref, sbin_ref, w_ref, b_ref, g_ref, be_ref,
                             y_ref, sb_ref, sum_ref, ssq_ref, *, m_true, tm, has_pad):
    """h = relu(y_in*scale+bias) (prev BN fused, f32 epilogue); y = h @ W + b; BN stats."""
    i = pl.program_id(1)
    yin = yin_ref[...].astype(jnp.float32)
    h = jnp.maximum(yin * sbin_ref[0:1, :] + sbin_ref[1:2, :], 0.0)
    y = jnp.dot(h.astype(jnp.bfloat16), w_ref[...],
                preferred_element_type=jnp.float32) + b_ref[...]
    y_ref[...] = y.astype(y_ref.dtype)          # bf16 intermediate to HBM
    _stats_update(i, y, sum_ref, ssq_ref, m_true=m_true, tm=tm, has_pad=has_pad)
    _stats_finalize(i, g_ref, be_ref, sb_ref, sum_ref, ssq_ref, m_true=m_true)


def _act_linear_kernel(yin_ref, sbin_ref, w_ref, b_ref, o_ref):
    """h = relu(y_in*scale+bias) (prev BN fused); out = h @ W + b (f32 output)."""
    yin = yin_ref[...].astype(jnp.float32)
    h = jnp.maximum(yin * sbin_ref[0:1, :] + sbin_ref[1:2, :], 0.0)
    o_ref[...] = jnp.dot(h.astype(jnp.bfloat16), w_ref[...],
                         preferred_element_type=jnp.float32) + b_ref[...]


# -----------------------------------------------------------------------------
# pallas_call wrappers
# -----------------------------------------------------------------------------
def _linear_bn_call(x_p, w_p, b_p, g_p, be_p, *, m_true, tm, tn, vmem_limit):
    Mp, Kp = x_p.shape
    Cp = w_p.shape[1]
    has_pad = Mp > m_true
    kernel = functools.partial(_linear_stats_kernel, m_true=m_true, tm=tm, has_pad=has_pad)
    return pl.pallas_call(
        kernel,
        out_shape=(jax.ShapeDtypeStruct((Mp, Cp), jnp.bfloat16),
                   jax.ShapeDtypeStruct((2, Cp), jnp.float32)),
        grid=(Cp // tn, Mp // tm),
        in_specs=[
            pl.BlockSpec((tm, Kp), lambda j, i: (i, 0)),
            pl.BlockSpec((Kp, tn), lambda j, i: (0, j)),
            pl.BlockSpec((1, tn), lambda j, i: (0, j)),
            pl.BlockSpec((1, tn), lambda j, i: (0, j)),
            pl.BlockSpec((1, tn), lambda j, i: (0, j)),
        ],
        out_specs=(pl.BlockSpec((tm, tn), lambda j, i: (i, j)),
                   pl.BlockSpec((2, tn), lambda j, i: (0, j))),
        scratch_shapes=[pltpu.VMEM((1, tn), jnp.float32),
                        pltpu.VMEM((1, tn), jnp.float32)],
        compiler_params=pltpu.CompilerParams(
            dimension_semantics=("parallel", "arbitrary"),  # cols megacore / rows accumulate
            vmem_limit_bytes=vmem_limit),
    )(x_p, w_p, b_p, g_p, be_p)


def _act_linear_bn_call(y_in, sb_in, w_p, b_p, g_p, be_p, *, m_true, tm, tn, vmem_limit):
    Mp, Kp = y_in.shape
    Cp = w_p.shape[1]
    has_pad = Mp > m_true
    kernel = functools.partial(_act_linear_stats_kernel, m_true=m_true, tm=tm, has_pad=has_pad)
    return pl.pallas_call(
        kernel,
        out_shape=(jax.ShapeDtypeStruct((Mp, Cp), jnp.bfloat16),
                   jax.ShapeDtypeStruct((2, Cp), jnp.float32)),
        grid=(Cp // tn, Mp // tm),
        in_specs=[
            pl.BlockSpec((tm, Kp), lambda j, i: (i, 0)),
            pl.BlockSpec((2, Kp), lambda j, i: (0, 0)),
            pl.BlockSpec((Kp, tn), lambda j, i: (0, j)),
            pl.BlockSpec((1, tn), lambda j, i: (0, j)),
            pl.BlockSpec((1, tn), lambda j, i: (0, j)),
            pl.BlockSpec((1, tn), lambda j, i: (0, j)),
        ],
        out_specs=(pl.BlockSpec((tm, tn), lambda j, i: (i, j)),
                   pl.BlockSpec((2, tn), lambda j, i: (0, j))),
        scratch_shapes=[pltpu.VMEM((1, tn), jnp.float32),
                        pltpu.VMEM((1, tn), jnp.float32)],
        compiler_params=pltpu.CompilerParams(
            dimension_semantics=("parallel", "arbitrary"),
            vmem_limit_bytes=vmem_limit),
    )(y_in, sb_in, w_p, b_p, g_p, be_p)


def _act_linear_call(y_in, sb_in, w_p, b_p, *, tm, tn, vmem_limit):
    Mp, Kp = y_in.shape
    Cp = w_p.shape[1]
    return pl.pallas_call(
        _act_linear_kernel,
        out_shape=jax.ShapeDtypeStruct((Mp, Cp), jnp.float32),
        grid=(Cp // tn, Mp // tm),
        in_specs=[
            pl.BlockSpec((tm, Kp), lambda j, i: (i, 0)),
            pl.BlockSpec((2, Kp), lambda j, i: (0, 0)),
            pl.BlockSpec((Kp, tn), lambda j, i: (0, j)),
            pl.BlockSpec((1, tn), lambda j, i: (0, j)),
        ],
        out_specs=pl.BlockSpec((tm, tn), lambda j, i: (i, j)),
        compiler_params=pltpu.CompilerParams(
            dimension_semantics=("parallel", "parallel"),   # no cross-tile state
            vmem_limit_bytes=vmem_limit),
    )(y_in, sb_in, w_p, b_p)


# -----------------------------------------------------------------------------
# JAX glue: one-time parameter prep, forward, reference
# -----------------------------------------------------------------------------
def _pad2d(a, rows, cols, dtype=jnp.float32):
    a = a.astype(jnp.float32)
    return jnp.pad(a, ((0, rows - a.shape[0]), (0, cols - a.shape[1]))).astype(dtype)


def _pad_row(v, cols):
    v = v.reshape(1, -1).astype(jnp.float32)
    return jnp.pad(v, ((0, 0), (0, cols - v.shape[1])))


def prepare_params(params):
    """One-time prep: transpose + zero-pad to lane-dense (128-multiple) feature dims
    and cast weights to bf16.  Hoisted out of the per-forward path."""
    dim = params["w1"].shape[1]
    hid = params["w1"].shape[0]
    hid2 = params["w2"].shape[0]
    proj = params["w3"].shape[0]
    Kp = _round_up(dim, 128)
    C1p = _round_up(hid, 128)
    C2p = _round_up(hid2, 128)
    C3p = _round_up(proj, 128)
    prep = {
        "dim": dim, "proj": proj, "Kp": Kp, "C1p": C1p, "C2p": C2p, "C3p": C3p,
        "w1": _pad2d(params["w1"].T, Kp, C1p, jnp.bfloat16),
        "w2": _pad2d(params["w2"].T, C1p, C2p, jnp.bfloat16),
        "w3": _pad2d(params["w3"].T, C2p, C3p, jnp.bfloat16),
        "b1": _pad_row(params["b1"], C1p), "g1": _pad_row(params["g1"], C1p),
        "be1": _pad_row(params["be1"], C1p),
        "b2": _pad_row(params["b2"], C2p), "g2": _pad_row(params["g2"], C2p),
        "be2": _pad_row(params["be2"], C2p),
        "b3": _pad_row(params["b3"], C3p),
    }
    return prep


def mlp_forward(x, prep, block_rows=None):
    """Pallas-backed MLP forward. x: (B, dim) f32 -> (B, projection_size) f32."""
    M, dim = x.shape
    assert dim == prep["dim"]
    Kp, C1p, C2p, C3p = prep["Kp"], prep["C1p"], prep["C2p"], prep["C3p"]
    proj = prep["proj"]

    # Row tiling: 16-multiple (bf16 sublane packing); minimize padded rows.
    Mp0 = _round_up(M, 16)
    if block_rows is None:
        ntiles = -(-Mp0 // TM_MAX)
        tm = _round_up(-(-Mp0 // ntiles), 16)
    else:
        tm = min(max(16, _round_up(block_rows, 16)), Mp0)
    Mp = _round_up(Mp0, tm)

    vmem_limit = _vmem_limit_bytes()
    budget = _vmem_tile_budget_bytes()
    tn1 = _pick_tn(Kp, C1p, tm, 4, 2, budget, epilogue=False)
    tn2 = _pick_tn(C1p, C2p, tm, 2, 2, budget, epilogue=True)
    tn3 = _pick_tn(C2p, C3p, tm, 2, 4, budget, epilogue=True)

    # x stays f32 (cast to bf16 inside the layer-1 kernel); pad only if needed.
    x_p = x.astype(jnp.float32)
    if (Mp, Kp) != (M, dim):
        x_p = jnp.pad(x_p, ((0, Mp - M), (0, Kp - dim)))

    # Layer 1: Linear + BN1 stats -> (y1 bf16, scale/bias for BN1)
    y1, sb1 = _linear_bn_call(x_p, prep["w1"], prep["b1"], prep["g1"], prep["be1"],
                              m_true=M, tm=tm, tn=tn1, vmem_limit=vmem_limit)
    # Layer 2: (BN1+ReLU fused) Linear + BN2 stats -> (y2 bf16, scale/bias for BN2)
    y2, sb2 = _act_linear_bn_call(y1, sb1, prep["w2"], prep["b2"], prep["g2"], prep["be2"],
                                  m_true=M, tm=tm, tn=tn2, vmem_limit=vmem_limit)
    # Layer 3: (BN2+ReLU fused) Linear -> projection (f32)
    out = _act_linear_call(y2, sb2, prep["w3"], prep["b3"],
                           tm=tm, tn=tn3, vmem_limit=vmem_limit)

    return out[:M, :proj]


def init_params(key, dim, projection_size, hidden_size):
    """PyTorch-default-like init: Linear kaiming-uniform (bound=1/sqrt(fan_in)) for
    weight & bias; BatchNorm1d gamma=1, beta=0."""
    ks = jax.random.split(key, 6)

    def linear(kw, kb, fan_out, fan_in):
        bound = 1.0 / np.sqrt(fan_in)
        w = jax.random.uniform(kw, (fan_out, fan_in), jnp.float32, -bound, bound)
        b = jax.random.uniform(kb, (fan_out,), jnp.float32, -bound, bound)
        return w, b

    w1, b1 = linear(ks[0], ks[1], hidden_size, dim)
    w2, b2 = linear(ks[2], ks[3], hidden_size // 2, hidden_size)
    w3, b3 = linear(ks[4], ks[5], projection_size, hidden_size // 2)
    return {
        "w1": w1, "b1": b1, "g1": jnp.ones((hidden_size,), jnp.float32),
        "be1": jnp.zeros((hidden_size,), jnp.float32),
        "w2": w2, "b2": b2, "g2": jnp.ones((hidden_size // 2,), jnp.float32),
        "be2": jnp.zeros((hidden_size // 2,), jnp.float32),
        "w3": w3, "b3": b3,
    }


def ref_forward(x, params):
    """Pure-JAX reference (PyTorch MLP.forward, training-mode BatchNorm1d)."""
    def bn_relu(y, g, b):
        m = jnp.mean(y, axis=0, keepdims=True)
        v = jnp.mean((y - m) ** 2, axis=0, keepdims=True)
        return jnp.maximum((y - m) * jax.lax.rsqrt(v + BN_EPS) * g + b, 0.0)

    h = bn_relu(x @ params["w1"].T + params["b1"], params["g1"], params["be1"])
    h = bn_relu(h @ params["w2"].T + params["b2"], params["g2"], params["be2"])
    return h @ params["w3"].T + params["b3"]


# -----------------------------------------------------------------------------
if __name__ == "__main__":
    dim, hidden, proj = 32, 64, 16
    key = jax.random.PRNGKey(0)
    kx, kp = jax.random.split(key)
    params = init_params(kp, dim, proj, hidden)
    prep = prepare_params(params)          # one-time weight prep (hoisted)

    # Run 1: default tiling (single row tile at this small batch).
    x = jax.random.normal(kx, (64, dim), jnp.float32)
    out = jax.block_until_ready(mlp_forward(x, prep))
    assert out.shape == (64, proj), out.shape
    ref = jax.block_until_ready(ref_forward(x, params))
    np.testing.assert_allclose(np.asarray(out), np.asarray(ref), rtol=3e-2, atol=3e-2)

    # Run 2: ragged batch with small row tiles — exercises multi-tile partial-stat
    # accumulation, last-tile padded-row masking, and the finalize path.
    x2 = jax.random.normal(jax.random.PRNGKey(1), (30, dim), jnp.float32)
    out2 = jax.block_until_ready(mlp_forward(x2, prep, block_rows=16))
    assert out2.shape == (30, proj), out2.shape
    ref2 = jax.block_until_ready(ref_forward(x2, params))
    np.testing.assert_allclose(np.asarray(out2), np.asarray(ref2), rtol=3e-2, atol=3e-2)

    print("KERNEL_OK")
</pallas_src>

<mosaic_0001>
module attributes {stable_mosaic.version = 11 : i64} {
  func.func @_linear_stats_kernel(%arg0: i32, %arg1: i32, %arg2: memref<64x128xf32, #tpu.memory_space<vmem>>, %arg3: memref<128x128xbf16, #tpu.memory_space<vmem>>, %arg4: memref<1x128xf32, #tpu.memory_space<vmem>>, %arg5: memref<1x128xf32, #tpu.memory_space<vmem>>, %arg6: memref<1x128xf32, #tpu.memory_space<vmem>>, %arg7: memref<64x128xbf16, #tpu.memory_space<vmem>>, %arg8: memref<2x128xf32, #tpu.memory_space<vmem>>, %arg9: memref<1x128xf32, #tpu.memory_space<vmem>>, %arg10: memref<1x128xf32, #tpu.memory_space<vmem>>) attributes {dimension_semantics = [#tpu.dimension_semantics<parallel>, #tpu.dimension_semantics<arbitrary>], iteration_bounds = array<i64: 1, 1>, scalar_prefetch = 0 : i64, scratch_operands = 2 : i64, tpu.core_type = #tpu.core_type<tc>, window_params = [{transform_indices = @transform_0, window_bounds = array<i64: 64, 128>}, {transform_indices = @transform_1, window_bounds = array<i64: 128, 128>}, {transform_indices = @transform_2, window_bounds = array<i64: 1, 128>}, {transform_indices = @transform_3, window_bounds = array<i64: 1, 128>}, {transform_indices = @transform_4, window_bounds = array<i64: 1, 128>}, {transform_indices = @transform_5, window_bounds = array<i64: 64, 128>}, {transform_indices = @transform_6, window_bounds = array<i64: 2, 128>}]} {
    %c0 = arith.constant 0 : index
    %c0_0 = arith.constant 0 : index
    %0 = vector.load %arg2[%c0, %c0_0] : memref<64x128xf32, #tpu.memory_space<vmem>>, vector<64x128xf32>
    %1 = arith.truncf %0 : vector<64x128xf32> to vector<64x128xbf16>
    %c0_1 = arith.constant 0 : index
    %c0_2 = arith.constant 0 : index
    %2 = vector.load %arg3[%c0_1, %c0_2] : memref<128x128xbf16, #tpu.memory_space<vmem>>, vector<128x128xbf16>
    %cst = arith.constant dense<0.000000e+00> : vector<64x128xf32>
    %3 = tpu.matmul %1, %2, %cst {dimension_numbers = #tpu.dot_dimension_numbers<[1], [0], [0], [1], [0, 0, 1, 1], [], []>} : vector<64x128xbf16>, vector<128x128xbf16>, vector<64x128xf32> -> vector<64x128xf32>
    %c0_3 = arith.constant 0 : index
    %c0_4 = arith.constant 0 : index
    %4 = vector.load %arg4[%c0_3, %c0_4] : memref<1x128xf32, #tpu.memory_space<vmem>>, vector<1x128xf32>
    %5 = vector.broadcast %4 : vector<1x128xf32> to vector<64x128xf32>
    %6 = arith.addf %3, %5 : vector<64x128xf32>
    %7 = arith.truncf %6 : vector<64x128xf32> to vector<64x128xbf16>
    %c0_5 = arith.constant 0 : index
    %c0_6 = arith.constant 0 : index
    %8 = vector.load %arg7[%c0_5, %c0_6] : memref<64x128xbf16, #tpu.memory_space<vmem>>, vector<64x128xbf16>
    tpu.vector_store %arg7[%c0_5, %c0_6], %7 {strides = array<i32>} : memref<64x128xbf16, #tpu.memory_space<vmem>>, vector<64x128xbf16>,
    %c0_i32 = arith.constant 0 : i32
    %9 = arith.cmpi eq, %arg1, %c0_i32 : i32
    %10 = arith.extui %9 : i1 to i32
    %c0_i32_7 = arith.constant 0 : i32
    %11 = arith.cmpi ne, %10, %c0_i32_7 : i32
    scf.if %11 {
      %cst_20 = arith.constant 0.000000e+00 : f32
      %26 = vector.broadcast %cst_20 : f32 to vector<1x128xf32>
      %c0_21 = arith.constant 0 : index
      %c0_22 = arith.constant 0 : index
      %27 = vector.load %arg9[%c0_21, %c0_22] : memref<1x128xf32, #tpu.memory_space<vmem>>, vector<1x128xf32>
      tpu.vector_store %arg9[%c0_21, %c0_22], %26 {strides = array<i32>} : memref<1x128xf32, #tpu.memory_space<vmem>>, vector<1x128xf32>,
      %cst_23 = arith.constant 0.000000e+00 : f32
      %28 = vector.broadcast %cst_23 : f32 to vector<1x128xf32>
      %c0_24 = arith.constant 0 : index
      %c0_25 = arith.constant 0 : index
      %29 = vector.load %arg10[%c0_24, %c0_25] : memref<1x128xf32, #tpu.memory_space<vmem>>, vector<1x128xf32>
      tpu.vector_store %arg10[%c0_24, %c0_25], %28 {strides = array<i32>} : memref<1x128xf32, #tpu.memory_space<vmem>>, vector<1x128xf32>,
    } else {
    }
    %c0_8 = arith.constant 0 : index
    %c0_9 = arith.constant 0 : index
    %12 = vector.load %arg9[%c0_8, %c0_9] : memref<1x128xf32, #tpu.memory_space<vmem>>, vector<1x128xf32>
    %cst_10 = arith.constant dense<0.000000e+00> : vector<128xf32>
    %13 = vector.multi_reduction <add>, %6, %cst_10 [0] : vector<64x128xf32> to vector<128xf32>
    %14 = vector.shape_cast %13 : vector<128xf32> to vector<1x128xf32>
    %15 = arith.addf %12, %14 : vector<1x128xf32>
    %c0_11 = arith.constant 0 : index
    %c0_12 = arith.constant 0 : index
    %16 = vector.load %arg9[%c0_11, %c0_12] : memref<1x128xf32, #tpu.memory_space<vmem>>, vector<1x128xf32>
    tpu.vector_store %arg9[%c0_11, %c0_12], %15 {strides = array<i32>} : memref<1x128xf32, #tpu.memory_space<vmem>>, vector<1x128xf32>,
    %c0_13 = arith.constant 0 : index
    %c0_14 = arith.constant 0 : index
    %17 = vector.load %arg10[%c0_13, %c0_14] : memref<1x128xf32, #tpu.memory_space<vmem>>, vector<1x128xf32>
    %18 = arith.mulf %6, %6 : vector<64x128xf32>
    %cst_15 = arith.constant dense<0.000000e+00> : vector<128xf32>
    %19 = vector.multi_reduction <add>, %18, %cst_15 [0] : vector<64x128xf32> to vector<128xf32>
    %20 = vector.shape_cast %19 : vector<128xf32> to vector<1x128xf32>
    %21 = arith.addf %17, %20 : vector<1x128xf32>
    %c0_16 = arith.constant 0 : index
    %c0_17 = arith.constant 0 : index
    %22 = vector.load %arg10[%c0_16, %c0_17] : memref<1x128xf32, #tpu.memory_space<vmem>>, vector<1x128xf32>
    tpu.vector_store %arg10[%c0_16, %c0_17], %21 {strides = array<i32>} : memref<1x128xf32, #tpu.memory_space<vmem>>, vector<1x128xf32>,
    %c0_i32_18 = arith.constant 0 : i32
    %23 = arith.cmpi eq, %arg1, %c0_i32_18 : i32
    %24 = arith.extui %23 : i1 to i32
    %c0_i32_19 = arith.constant 0 : i32
    %25 = arith.cmpi ne, %24, %c0_i32_19 : i32
    scf.if %25 {
      %c0_20 = arith.constant 0 : index
      %c0_21 = arith.constant 0 : index
      %26 = vector.load %arg9[%c0_20, %c0_21] : memref<1x128xf32, #tpu.memory_space<vmem>>, vector<1x128xf32>
      %cst_22 = arith.constant 1.562500e-02 : f32
      %27 = vector.broadcast %cst_22 : f32 to vector<1x128xf32>
      %28 = arith.mulf %26, %27 : vector<1x128xf32>
      %c0_23 = arith.constant 0 : index
      %c0_24 = arith.constant 0 : index
      %29 = vector.load %arg10[%c0_23, %c0_24] : memref<1x128xf32, #tpu.memory_space<vmem>>, vector<1x128xf32>
      %cst_25 = arith.constant 1.562500e-02 : f32
      %30 = vector.broadcast %cst_25 : f32 to vector<1x128xf32>
      %31 = arith.mulf %29, %30 : vector<1x128xf32>
      %32 = arith.mulf %28, %28 : vector<1x128xf32>
      %33 = arith.subf %31, %32 : vector<1x128xf32>
      %cst_26 = arith.constant 0.000000e+00 : f32
      %34 = vector.broadcast %cst_26 : f32 to vector<1x128xf32>
      %35 = arith.maximumf %33, %34 : vector<1x128xf32>
      %c0_27 = arith.constant 0 : index
      %c0_28 = arith.constant 0 : index
      %36 = vector.load %arg5[%c0_27, %c0_28] : memref<1x128xf32, #tpu.memory_space<vmem>>, vector<1x128xf32>
      %cst_29 = arith.constant 9.99999974E-6 : f32
      %37 = vector.broadcast %cst_29 : f32 to vector<1x128xf32>
      %38 = arith.addf %35, %37 : vector<1x128xf32>
      %39 = math.rsqrt %38 : vector<1x128xf32>
      %40 = arith.mulf %36, %39 : vector<1x128xf32>
      %c0_30 = arith.constant 0 : index
      %c0_31 = arith.constant 0 : index
      %41 = vector.load %arg8[%c0_30, %c0_31] : memref<2x128xf32, #tpu.memory_space<vmem>>, vector<1x128xf32>
      tpu.vector_store %arg8[%c0_30, %c0_31], %40 {strides = array<i32>} : memref<2x128xf32, #tpu.memory_space<vmem>>, vector<1x128xf32>,
      %c0_32 = arith.constant 0 : index
      %c0_33 = arith.constant 0 : index
      %42 = vector.load %arg6[%c0_32, %c0_33] : memref<1x128xf32, #tpu.memory_space<vmem>>, vector<1x128xf32>
      %43 = arith.mulf %28, %40 : vector<1x128xf32>
      %44 = arith.subf %42, %43 : vector<1x128xf32>
      %c1 = arith.constant 1 : index
      %c0_34 = arith.constant 0 : index
      %45 = vector.load %arg8[%c1, %c0_34] : memref<2x128xf32, #tpu.memory_space<vmem>>, vector<1x128xf32>
      tpu.vector_store %arg8[%c1, %c0_34], %44 {strides = array<i32>} : memref<2x128xf32, #tpu.memory_space<vmem>>, vector<1x128xf32>,
    } else {
    }
    return
  }
  func.func @transform_0(%arg0: i32, %arg1: i32) -> (i32, i32) {
    %c0_i32 = arith.constant 0 : i32
    %c0_i32_0 = arith.constant 0 : i32
    return %arg1, %c0_i32 : i32, i32
  }
  func.func @transform_1(%arg0: i32, %arg1: i32) -> (i32, i32) {
    %c0_i32 = arith.constant 0 : i32
    %c0_i32_0 = arith.constant 0 : i32
    return %c0_i32, %arg0 : i32, i32
  }
  func.func @transform_2(%arg0: i32, %arg1: i32) -> (i32, i32) {
    %c0_i32 = arith.constant 0 : i32
    %c0_i32_0 = arith.constant 0 : i32
    return %c0_i32, %arg0 : i32, i32
  }
  func.func @transform_3(%arg0: i32, %arg1: i32) -> (i32, i32) {
    %c0_i32 = arith.constant 0 : i32
    %c0_i32_0 = arith.constant 0 : i32
    return %c0_i32, %arg0 : i32, i32
  }
  func.func @transform_4(%arg0: i32, %arg1: i32) -> (i32, i32) {
    %c0_i32 = arith.constant 0 : i32
    %c0_i32_0 = arith.constant 0 : i32
    return %c0_i32, %arg0 : i32, i32
  }
  func.func @transform_5(%arg0: i32, %arg1: i32) -> (i32, i32) {
    %c0_i32 = arith.constant 0 : i32
    return %arg1, %arg0 : i32, i32
  }
  func.func @transform_6(%arg0: i32, %arg1: i32) -> (i32, i32) {
    %c0_i32 = arith.constant 0 : i32
    %c0_i32_0 = arith.constant 0 : i32
    return %c0_i32, %arg0 : i32, i32
  }
}

</mosaic_0001>

<llo_original>
// kernel: tpu_custom_call.1
$region0: #{tpu_custom_call.1}
  #allocation0 [shape = 'u32[]', space=smem, size = 0x4, offset = 0x4, fixed_abs, tag = 'smem constant byte address 0x4 - core index']
  #allocation1 [shape = 'u32[144,128]{1,0:T(1,128)}', space=vmem, size = 0x12000, scoped, tag = 'internal scratch']
  #allocation2 [shape = 'f32[1,128]{1,0:T(1,128)}', space=vmem, size = 0x200, scoped, tag = 'scratch operand']
  #allocation3 [shape = 'f32[1,128]{1,0:T(1,128)}', space=vmem, size = 0x200, scoped, tag = 'scratch operand']
  %s0 = inlined_call_operand.hbm [shape: f32[64,128], index: 0, kind: input, shape index: {}]
  %s1 = inlined_call_operand.hbm [shape: bf16[128,128], index: 1, kind: input, shape index: {}]
  %s2 = inlined_call_operand.vmem [shape: f32[1,128], index: 2, kind: input, shape index: {}]
  %s3 = inlined_call_operand.vmem [shape: f32[1,128], index: 3, kind: input, shape index: {}]
  %s4 = inlined_call_operand.vmem [shape: f32[1,128], index: 4, kind: input, shape index: {}]
  %s5 = inlined_call_operand.hbm [shape: bf16[64,128], index: 5, kind: output, shape index: {0}]
  %s6 = inlined_call_operand.hbm [shape: f32[2,128], index: 6, kind: output, shape index: {1}]
  %7 = xla_tuple %s5, %s6
  %s8 = sld [smem:[#allocation0]]
  $region54: #{tpu_custom_call.1} parent=0
    _
  %s10 = ssub.s32 1, %s8
  %s11 = scalar_select 0, %s10, %s8
  $region1: #{tpu_custom_call.1} parent=0
    #allocation4 [shape = 'u8[32768]{0}', space=vmem, size = 0x8000, scoped, tag = 'input window, operand 0, single buffered']
    #allocation5 [shape = 's32[1]{0}', space=sflag, size = 0x4, scoped, tag = 'scoped memory for tpu_custom_call.1']
    #allocation6 [shape = 's32[1]{0}', space=sflag, size = 0x4, scoped, tag = 'scoped memory for tpu_custom_call.1']
    #allocation7 [shape = 'u8[32768]{0}', space=vmem, size = 0x8000, scoped, tag = 'input window, operand 1, single buffered']
    #allocation8 [shape = 's32[1]{0}', space=sflag, size = 0x4, scoped, tag = 'scoped memory for tpu_custom_call.1']
    #allocation9 [shape = 'u8[16384]{0}', space=vmem, size = 0x4000, scoped, tag = 'output window, operand 0, single buffered']
    #allocation10 [shape = 'u8[1024]{0}', space=vmem, size = 0x400, scoped, tag = 'output window, operand 1, single buffered']
    #allocation11 [shape = 's32[1]{0}', space=sflag, size = 0x4, scoped, tag = 'scoped memory for tpu_custom_call.1']
    %12 = vsyncpa [#allocation5], 0
    %13 = vsyncpa [#allocation8], 0
    %14 = vsyncpa [#allocation6], 0
    %15 = vsyncpa [#allocation11], 0
    // Predicated region
    $region2: #{tpu_custom_call.1} parent=1 // pred_check
      _
    $region3: #{tpu_custom_call.1} parent=1 // pred_check_branch
      %17 = sbr.rel (0) target = $region5
    $region4: #{tpu_custom_call.1} parent=1 // pred_region
      %s19 = ssub.s32 1024, 1024
      %20 = vsyncadd [#allocation5], %s19
      %s21 = sshll.u32 [#allocation4], 4
      %s22 = int_to_ptr.vmem [resolvable:$true] %s21
      %27 = dma.hbm_to_vmem [thread:$0]  %s0, 1024, %s22, [#allocation5], 128, 128, 8
    $region5: #{tpu_custom_call.1} parent=1 // pred_fallthru
      _
    // Predicated region
    $region6: #{tpu_custom_call.1} parent=1 // pred_check
      _
    $region7: #{tpu_custom_call.1} parent=1 // pred_check_branch
      %29 = sbr.rel (0) target = $region9
    $region8: #{tpu_custom_call.1} parent=1 // pred_region
      %s31 = ssub.s32 1024, 1024
      %32 = vsyncadd [#allocation8], %s31
      %s33 = sshll.u32 [#allocation7], 4
      %s34 = int_to_ptr.vmem [resolvable:$true] %s33
      %39 = dma.hbm_to_vmem [thread:$0]  %s1, 1024, %s34, [#allocation8], 64, 64, 4
    $region9: #{tpu_custom_call.1} parent=1 // pred_fallthru
      _
    // Predicated region
    $region10: #{tpu_custom_call.1} parent=1 // pred_check
      _
    $region11: #{tpu_custom_call.1} parent=1 // pred_check_branch
      %41 = sbr.rel (0) target = $region13
    $region12: #{tpu_custom_call.1} parent=1 // pred_region
      _
    $region13: #{tpu_custom_call.1} parent=1 // pred_fallthru
      _
    // Predicated region
    $region14: #{tpu_custom_call.1} parent=1 // pred_check
      _
    $region15: #{tpu_custom_call.1} parent=1 // pred_check_branch
      %43 = sbr.rel (0) target = $region17
    $region16: #{tpu_custom_call.1} parent=1 // pred_region
      _
    $region17: #{tpu_custom_call.1} parent=1 // pred_fallthru
      _
    // Predicated region
    $region18: #{tpu_custom_call.1} parent=1 // pred_check
      _
    $region19: #{tpu_custom_call.1} parent=1 // pred_check_branch
      %45 = sbr.rel (0) target = $region21
    $region20: #{tpu_custom_call.1} parent=1 // pred_region
      _
    $region21: #{tpu_custom_call.1} parent=1 // pred_fallthru
      _
    // Predicated region
    $region22: #{tpu_custom_call.1} parent=1 // pred_check
      _
    $region23: #{tpu_custom_call.1} parent=1 // pred_check_branch
      %47 = sbr.rel (0) target = $region25
    $region24: #{tpu_custom_call.1} parent=1 // pred_region
      %48 = dma.done [#allocation5], 1024
    $region25: #{tpu_custom_call.1} parent=1 // pred_fallthru
      _
    // Predicated region
    $region26: #{tpu_custom_call.1} parent=1 // pred_check
      _
    $region27: #{tpu_custom_call.1} parent=1 // pred_check_branch
      %50 = sbr.rel (0) target = $region29
    $region28: #{tpu_custom_call.1} parent=1 // pred_region
      %51 = dma.done [#allocation8], 1024
    $region29: #{tpu_custom_call.1} parent=1 // pred_fallthru
      _
    %v53 = vld [vmem:[#allocation4] sm:$0xff]
    %v54 = vld [vmem:[#allocation4 + $0x8] sm:$0xff]
    %v55 = vld [vmem:[#allocation4 + $0x10] sm:$0xff]
    %v56 = vld [vmem:[#allocation4 + $0x18] sm:$0xff]
    %v57 = vld [vmem:[#allocation4 + $0x20] sm:$0xff]
    %v58 = vld [vmem:[#allocation4 + $0x28] sm:$0xff]
    %v59 = vld [vmem:[#allocation4 + $0x30] sm:$0xff]
    %v60 = vld [vmem:[#allocation4 + $0x38] sm:$0xff]
    %v61 = vpack.c.bf16 %v54, %v53
    %v62 = vpack.c.bf16 %v56, %v55
    %v63 = vpack.c.bf16 %v58, %v57
    %v64 = vpack.c.bf16 %v60, %v59
    %v65 = vld [vmem:[#allocation7] sm:$0xf]
    %v66 = vld [vmem:[#allocation7 + $0x4] sm:$0xf]
    %v67 = vld [vmem:[#allocation7 + $0x8] sm:$0xf]
    %v68 = vld [vmem:[#allocation7 + $0xc] sm:$0xf]
    %v69 = vld [vmem:[#allocation7 + $0x10] sm:$0xf]
    %v70 = vld [vmem:[#allocation7 + $0x14] sm:$0xf]
    %v71 = vld [vmem:[#allocation7 + $0x18] sm:$0xf]
    %v72 = vld [vmem:[#allocation7 + $0x1c] sm:$0xf]
    %v73 = vld [vmem:[#allocation7 + $0x20] sm:$0xf]
    %v74 = vld [vmem:[#allocation7 + $0x24] sm:$0xf]
    %v75 = vld [vmem:[#allocation7 + $0x28] sm:$0xf]
    %v76 = vld [vmem:[#allocation7 + $0x2c] sm:$0xf]
    %v77 = vld [vmem:[#allocation7 + $0x30] sm:$0xf]
    %v78 = vld [vmem:[#allocation7 + $0x34] sm:$0xf]
    %v79 = vld [vmem:[#allocation7 + $0x38] sm:$0xf]
    %v80 = vld [vmem:[#allocation7 + $0x3c] sm:$0xf]
    %v81 = vld [vmem:[%s2] sm:$0x1]
    %v83 = vlaneseq
    %v84 = vshrl.u32 %v83, 7
    %v85 = vsub.s32 0, %v84
    %v86 = vrot.slane %v81, %v85
    %v104 = vunpack.c.l.b16 %v65
    %v105 = vunpack.c.l.b16 %v66
    %v106 = vunpack.c.l.b16 %v67
    %v107 = vunpack.c.l.b16 %v68
    %v108 = vunpack.c.l.b16 %v69
    %v109 = vunpack.c.l.b16 %v70
    %v110 = vunpack.c.l.b16 %v71
    %v111 = vunpack.c.l.b16 %v72
    %v112 = vunpack.c.l.b16 %v73
    %v113 = vunpack.c.l.b16 %v74
    %v114 = vunpack.c.l.b16 %v75
    %v115 = vunpack.c.l.b16 %v76
    %v116 = vunpack.c.l.b16 %v77
    %v117 = vunpack.c.l.b16 %v78
    %v118 = vunpack.c.l.b16 %v79
    %v119 = vunpack.c.l.b16 %v80
    %v120 = vpack.c.b16 %v105, %v104
    %v121 = vpack.c.b16 %v107, %v106
    %v122 = vpack.c.b16 %v109, %v108
    %v123 = vpack.c.b16 %v111, %v110
    %v124 = vpack.c.b16 %v113, %v112
    %v125 = vpack.c.b16 %v115, %v114
    %v126 = vpack.c.b16 %v117, %v116
    %v127 = vpack.c.b16 %v119, %v118
    %136 = vmatprep.subr.bf16.mxu0 0
    %137 = vmatpush1.bf16.msra.mxu0 %v127
    %138 = vmatprep.subr.bf16.mxu0 0
    %139 = vmatpush1.bf16.msra.mxu0 %v126
    %140 = vmatprep.subr.bf16.mxu0 0
    %141 = vmatpush1.bf16.msra.mxu0 %v125
    %142 = vmatprep.subr.bf16.mxu0 0
    %143 = vmatpush1.bf16.msra.mxu0 %v124
    %144 = vmatprep.subr.bf16.mxu0 0
    %145 = vmatpush1.bf16.msra.mxu0 %v123
    %146 = vmatprep.subr.bf16.mxu0 0
    %147 = vmatpush1.bf16.msra.mxu0 %v122
    %148 = vmatprep.subr.bf16.mxu0 0
    %149 = vmatpush1.bf16.msra.mxu0 %v121
    %150 = vmatprep.subr.bf16.mxu0 0
    %151 = vmatpush1.bf16.msra.mxu0 %v120
    %152 = vmatprep.subr.bf16.mxu0 0
    %153 = vmatpush2.bf16.msra.mxu0 0
    %154 = vmatprep.subr.bf16.mxu0 0
    %155 = vmatpush2.bf16.msra.mxu0 0
    %156 = vmatprep.subr.bf16.mxu0 0
    %157 = vmatpush2.bf16.msra.mxu0 0
    %158 = vmatprep.subr.bf16.mxu0 0
    %159 = vmatpush2.bf16.msra.mxu0 0
    %160 = vmatprep.subr.bf16.mxu0 0
    %161 = vmatpush2.bf16.msra.mxu0 0
    %162 = vmatprep.subr.bf16.mxu0 0
    %163 = vmatpush2.bf16.msra.mxu0 0
    %164 = vmatprep.subr.bf16.mxu0 0
    %165 = vmatpush2.bf16.msra.mxu0 0
    %166 = vmatprep.subr.bf16.mxu0 0
    %167 = vmatpush2.bf16.msra.mxu0 0
    %168 = vmatprep.mubr.bf16.mxu0 0
    %169 = vmatmul.mubr.bf16.gmra.mxu0 %v61
    %v170 = vpop.f32.mrf.mxu0
    %v171 = vadd.f32 %v86, %v170
    %v172 = vpop.f32.mrf.mxu0
    %v173 = vpop.f32.mrf.mxu0
    %v174 = vadd.f32 %v86, %v173
    %v175 = vpop.f32.mrf.mxu0
    %176 = vmatprep.mubr.bf16.mxu0 0
    %177 = vmatmul.mubr.bf16.gmra.mxu0 %v62
    %v178 = vpop.f32.mrf.mxu0
    %v179 = vadd.f32 %v86, %v178
    %v180 = vpop.f32.mrf.mxu0
    %v181 = vpop.f32.mrf.mxu0
    %v182 = vadd.f32 %v86, %v181
    %v183 = vpop.f32.mrf.mxu0
    %184 = vmatprep.mubr.bf16.mxu0 0
    %185 = vmatmul.mubr.bf16.gmra.mxu0 %v63
    %v186 = vpop.f32.mrf.mxu0
    %v187 = vadd.f32 %v86, %v186
    %v188 = vpop.f32.mrf.mxu0
    %v189 = vpop.f32.mrf.mxu0
    %v190 = vadd.f32 %v86, %v189
    %v191 = vpop.f32.mrf.mxu0
    %192 = vmatprep.mubr.bf16.mxu0 0
    %193 = vmatmul.mubr.bf16.gmra.mxu0 %v64
    %v194 = vpop.f32.mrf.mxu0
    %v195 = vadd.f32 %v86, %v194
    %v196 = vpop.f32.mrf.mxu0
    %v197 = vpop.f32.mrf.mxu0
    %v198 = vadd.f32 %v86, %v197
    %v199 = vpop.f32.mrf.mxu0
    %200 = vdwg.mxu0
    %v201 = vpack.c.bf16 %v174, %v171
    %v202 = vpack.c.bf16 %v182, %v179
    %v203 = vpack.c.bf16 %v190, %v187
    %v204 = vpack.c.bf16 %v198, %v195
    %v209 = vunpack.c.l.b16 %v201
    %v210 = vunpack.c.h.b16 %v201
    %v211 = vunpack.c.l.b16 %v202
    %v212 = vunpack.c.h.b16 %v202
    %v213 = vunpack.c.l.b16 %v203
    %v214 = vunpack.c.h.b16 %v203
    %v215 = vunpack.c.l.b16 %v204
    %v216 = vunpack.c.h.b16 %v204
    %v217 = vpack.c.b16 %v209, %v209
    %v218 = vpack.c.b16 %v210, %v210
    %v219 = vpack.c.b16 %v211, %v211
    %v220 = vpack.c.b16 %v212, %v212
    %v221 = vpack.c.b16 %v213, %v213
    %v222 = vpack.c.b16 %v214, %v214
    %v223 = vpack.c.b16 %v215, %v215
    %v224 = vpack.c.b16 %v216, %v216
    %233 = vst [vmem:[#allocation9] sm:$0xf] %v217
    %234 = vst [vmem:[#allocation9 + $0x4] sm:$0xf] %v218
    %235 = vst [vmem:[#allocation9 + $0x8] sm:$0xf] %v219
    %236 = vst [vmem:[#allocation9 + $0xc] sm:$0xf] %v220
    %237 = vst [vmem:[#allocation9 + $0x10] sm:$0xf] %v221
    %238 = vst [vmem:[#allocation9 + $0x14] sm:$0xf] %v222
    %239 = vst [vmem:[#allocation9 + $0x18] sm:$0xf] %v223
    %240 = vst [vmem:[#allocation9 + $0x1c] sm:$0xf] %v224
    %p241 = scmp.eq.s32.totalorder 0, 0
    // Predicated region
    $region30: #{tpu_custom_call.1} parent=1 // pred_check
      %p242 = pneg %p241
    $region31: #{tpu_custom_call.1} parent=1 // pred_check_branch
      %244 = sbr.rel (%p242) target = $region33
    $region32: #{tpu_custom_call.1} parent=1 // pred_region
      %245 = vst [vmem:[#allocation2] sm:$0x1] 0.0
      %246 = vst [vmem:[#allocation3] sm:$0x1] 0.0
    $region33: #{tpu_custom_call.1} parent=1 // pred_fallthru
      _
    %v247 = vld [vmem:[#allocation2] sm:$0x1]
    %v248 = vadd.f32 %v171, %v174
    %v249 = vadd.f32 %v248, %v179
    %v250 = vadd.f32 %v249, %v182
    %v251 = vadd.f32 %v250, %v187
    %v252 = vadd.f32 %v251, %v190
    %v253 = vadd.f32 %v252, %v195
    %v254 = vadd.f32 %v253, %v198
    %v255 = vrot.slane %v254, 4
    %v256 = vadd.f32 %v254, %v255
    %v257 = vrot.slane %v256, 2
    %v258 = vadd.f32 %v256, %v257
    %v259 = vrot.slane %v258, 1
    %v260 = vadd.f32 %v258, %v259
    %v261 = vadd.f32 %v247, %v260
    %262 = vst [vmem:[#allocation2] sm:$0x1] %v261
    %v263 = vld [vmem:[#allocation3] sm:$0x1]
    %v264 = vmul.f32 %v171, %v171
    %v265 = vmul.f32 %v174, %v174
    %v266 = vmul.f32 %v179, %v179
    %v267 = vmul.f32 %v182, %v182
    %v268 = vmul.f32 %v187, %v187
    %v269 = vmul.f32 %v190, %v190
    %v270 = vmul.f32 %v195, %v195
    %v271 = vmul.f32 %v198, %v198
    %v272 = vadd.f32 %v264, %v265
    %v273 = vadd.f32 %v272, %v266
    %v274 = vadd.f32 %v273, %v267
    %v275 = vadd.f32 %v274, %v268
    %v276 = vadd.f32 %v275, %v269
    %v277 = vadd.f32 %v276, %v270
    %v278 = vadd.f32 %v277, %v271
    %v279 = vrot.slane %v278, 4
    %v280 = vadd.f32 %v278, %v279
    %v281 = vrot.slane %v280, 2
    %v282 = vadd.f32 %v280, %v281
    %v283 = vrot.slane %v282, 1
    %v284 = vadd.f32 %v282, %v283
    %v285 = vadd.f32 %v263, %v284
    %286 = vst [vmem:[#allocation3] sm:$0x1] %v285
    // Predicated region
    $region34: #{tpu_custom_call.1} parent=1 // pred_check
      %p287 = pneg %p241
    $region35: #{tpu_custom_call.1} parent=1 // pred_check_branch
      %289 = sbr.rel (%p287) target = $region37
    $region36: #{tpu_custom_call.1} parent=1 // pred_region
      %v290 = vld [vmem:[#allocation2] sm:$0x1]
      %v291 = vmul.f32 %v290, 0.015625
      %v292 = vld [vmem:[#allocation3] sm:$0x1]
      %v293 = vmul.f32 %v292, 0.015625
      %v294 = vmul.f32 %v291, %v291
      %v295 = vsub.f32 %v293, %v294
      %v296 = vmax.f32 %v295, 0.0
      %v297 = vld [vmem:[%s3] sm:$0x1]
      %v298 = vadd.f32 %v296, 1e-05
      %v299 = vrsqrt.pop %v298
      %v300 = vmul.f32 %v297, %v299
      %301 = vst [vmem:[#allocation10] sm:$0x1] %v300
      %v302 = vld [vmem:[%s4] sm:$0x1]
      %v303 = vmul.f32 %v291, %v300
      %v304 = vsub.f32 %v302, %v303
      %305 = vst [vmem:[#allocation10 + $0x1] sm:$0x1] %v304
    $region37: #{tpu_custom_call.1} parent=1 // pred_fallthru
      _
    // Predicated region
    $region38: #{tpu_custom_call.1} parent=1 // pred_check
      _
    $region39: #{tpu_custom_call.1} parent=1 // pred_check_branch
      %307 = sbr.rel (0) target = $region41
    $region40: #{tpu_custom_call.1} parent=1 // pred_region
      %s309 = ssub.s32 512, 512
      %310 = vsyncadd [#allocation6], %s309
      %s311 = sshll.u32 [#allocation9], 4
      %s312 = int_to_ptr.vmem [resolvable:$true] %s311
      %317 = dma.vmem_to_hbm [thread:$0]  %s312, 512, %s5, [#allocation6], 64, 64, 4
    $region41: #{tpu_custom_call.1} parent=1 // pred_fallthru
      _
    // Predicated region
    $region42: #{tpu_custom_call.1} parent=1 // pred_check
      _
    $region43: #{tpu_custom_call.1} parent=1 // pred_check_branch
      %319 = sbr.rel (0) target = $region45
    $region44: #{tpu_custom_call.1} parent=1 // pred_region
      %s321 = ssub.s32 32, 32
      %322 = vsyncadd [#allocation11], %s321
      %s324 = sshll.u32 [#allocation10], 4
      %s325 = int_to_ptr.vmem [resolvable:$true] %s324
      %327 = dma.vmem_to_hbm [thread:$0]  %s325, 32, %s6, [#allocation11]
    $region45: #{tpu_custom_call.1} parent=1 // pred_fallthru
      _
    // Predicated region
    $region46: #{tpu_custom_call.1} parent=1 // pred_check
      _
    $region47: #{tpu_custom_call.1} parent=1 // pred_check_branch
      %329 = sbr.rel (0) target = $region49
    $region48: #{tpu_custom_call.1} parent=1 // pred_region
      %330 = dma.done [#allocation6], 512
    $region49: #{tpu_custom_call.1} parent=1 // pred_fallthru
      _
    // Predicated region
    $region50: #{tpu_custom_call.1} parent=1 // pred_check
      _
    $region51: #{tpu_custom_call.1} parent=1 // pred_check_branch
      %332 = sbr.rel (0) target = $region53
    $region52: #{tpu_custom_call.1} parent=1 // pred_region
      %333 = dma.done [#allocation11], 32
    $region53: #{tpu_custom_call.1} parent=1 // pred_fallthru
      _
    %334 = vsyncpa [#allocation5], 1
    %335 = vsyncpa [#allocation8], 1
    %336 = vsyncpa [#allocation6], 1
    %337 = vsyncpa [#allocation11], 1

</llo_original>
